<compile_context>
chip_gen: v7x
topology: tpu7x:2x2x1
jax: 0.10.0
libtpu: 0.0.40
codegen_flags: <defaults>
</compile_context>

<pallas_src>
import functools

import numpy as np
import jax
import jax.numpy as jnp
from jax.experimental import pallas as pl
from jax.experimental.pallas import tpu as pltpu

# ----------------------------- model constants -----------------------------
B = 2                 # batch
T = 3                 # number of frames (frame_ids = [0, -1, 1])
H = W = 16            # image spatial size
PATCH = 4             # synthetic patch size
PH, PW = H // PATCH, W // PATCH
PATCH_DIM = 3 * PATCH * PATCH          # 48
CFEAT = 16            # synthetic "neck" feature channels
HEAD_MID = 8          # conv1/conv2 output channels
LORA_R = 14           # r[0] from the default r list
OTHER_FRAME_INIT_WEIGHT = 0.5


# ----------------------- static bilinear resize matrices --------------------
def _interp_matrix_np(out_size, in_size):
    """Row-stochastic bilinear interpolation matrix, align_corners=True."""
    m = np.zeros((out_size, in_size), np.float32)
    if out_size > 1 and in_size > 1:
        src = np.arange(out_size, dtype=np.float64) * ((in_size - 1) / (out_size - 1))
    else:
        src = np.zeros((out_size,), np.float64)
    lo = np.clip(np.floor(src).astype(np.int64), 0, in_size - 1)
    hi = np.clip(lo + 1, 0, in_size - 1)
    frac = (src - lo).astype(np.float32)
    for o in range(out_size):
        m[o, lo[o]] += 1.0 - frac[o]
        m[o, hi[o]] += frac[o]
    return m


@functools.lru_cache(maxsize=None)
def _resize_matrix(out_h, out_w, in_h, in_w):
    """Combined (out_h*out_w, in_h*in_w) matrix for separable bilinear resize."""
    lh = _interp_matrix_np(out_h, in_h)
    lw = _interp_matrix_np(out_w, in_w)
    r = np.einsum("ai,bj->abij", lh, lw).reshape(out_h * out_w, in_h * in_w)
    return jnp.asarray(r)


# ------------------------------ Pallas kernels ------------------------------
def _conv3x3_flat(x_flat, h, w, pad_ref, w_ref, b_ref):
    """3x3 'same' conv on a row-major flattened (h*w, Cin) tile -> (h*w, Cout).

    9 accumulating shifted-tap matmuls against a zero-padded VMEM scratch
    (pad_ref: (h*w + 2*(w+1), Cin)); horizontal edge taps are masked with an
    in-register column-index mask.  Everything stays 2-D (rows x channels),
    so there are no risky in-kernel reshapes / transposes.
    """
    hw = h * w
    cin = x_flat.shape[1]
    cout = w_ref.shape[1]
    pe = w + 1

    pad_ref[...] = jnp.zeros_like(pad_ref)
    pad_ref[pe:pe + hw, :] = x_flat

    col = jax.lax.broadcasted_iota(jnp.int32, (hw, 1), 0) % w
    acc = jnp.zeros((hw, cout), jnp.float32)
    k = 0
    for dy in (-1, 0, 1):
        for dx in (-1, 0, 1):
            off = pe + dy * w + dx
            tap = pad_ref[off:off + hw, :]
            if dx == -1:
                tap = jnp.where(col > 0, tap, 0.0)
            elif dx == 1:
                tap = jnp.where(col < w - 1, tap, 0.0)
            acc = acc + jnp.dot(tap, w_ref[k * cin:(k + 1) * cin, :],
                                preferred_element_type=jnp.float32)
            k += 1
    return acc + b_ref[...]


def fused_head_kernel(hs_d0, hs_d1, hs_d2, hs_d3,
                      r0, r1, r2, r3,
                      c1w, c1b, c2w, c2b, c3w, c3b,
                      o0, o1, o2, o3,
                      pad1, pad2_0, pad2_1, pad2_2, pad2_3,
                      *, out_sizes):
    """All four head scales for one batch element, fully in VMEM."""
    hs_refs = (hs_d0, hs_d1, hs_d2, hs_d3)
    r_refs = (r0, r1, r2, r3)
    o_refs = (o0, o1, o2, o3)
    pad2_refs = (pad2_0, pad2_1, pad2_2, pad2_3)

    for s in range(4):
        oh, ow = out_sizes[s]
        # conv1: 3x3, CFEAT -> HEAD_MID, on the (PH, PW) feature map.
        t1 = _conv3x3_flat(hs_refs[s][0], PH, PW, pad1, c1w, c1b)
        # bilinear resize (align_corners=True) as one precomputed matmul.
        t2 = jnp.dot(r_refs[s][...], t1, preferred_element_type=jnp.float32)
        # conv2: 3x3 + ReLU on the (oh, ow) map.
        t3 = jnp.maximum(_conv3x3_flat(t2, oh, ow, pad2_refs[s], c2w, c2b), 0.0)
        # conv3: 1x1 + Sigmoid.
        y = jnp.dot(t3, c3w[...], preferred_element_type=jnp.float32) + c3b[...]
        o_refs[s][0] = jax.nn.sigmoid(y)


def linear_kernel(x_ref, w_ref, b_ref, o_ref):
    o_ref[...] = (jnp.dot(x_ref[...], w_ref[...],
                          preferred_element_type=jnp.float32) + b_ref[...])


# ------------------------------ kernel wrappers ------------------------------
def lora_patch_embed(x, w, b, a, bb):
    """_LoRA_blk linear: y = x @ W + b + (x @ A) @ B.

    The low-rank update is folded into the dense weight once outside the
    kernel (W_eff = W + A @ B; exact since weights are static at inference),
    so the kernel is a single grid-less fused matmul + bias in VMEM.
    """
    w_eff = w + jnp.dot(a, bb)
    n = x.shape[0]
    dout = w.shape[1]
    return pl.pallas_call(
        linear_kernel,
        out_shape=jax.ShapeDtypeStruct((n, dout), jnp.float32),
    )(x, w_eff, b)


def fused_heads(params, hidden_states, h, w):
    """All four DepthAnythingDepthEstimationHead applications in one pallas_call.

    hidden_states: list of 4 arrays (B, PH, PW, CFEAT) in neck order [0..3].
    Returns a list of 4 NHWC arrays (B, oh_s, ow_s, 1) for disp scales 0..3.
    """
    bsz = hidden_states[0].shape[0]
    out_sizes = [(int(h), int(w)),
                 (int(h) // 2, int(w) // 2),
                 (int(h) // 4, int(w) // 4),
                 (int(h) // 8, int(w) // 8)]
    # disp scale s consumes hidden_states[3 - s]; flatten spatial (free reshape).
    hs_in = [hidden_states[3 - s].reshape(bsz, PH * PW, CFEAT) for s in range(4)]
    r_mats = [_resize_matrix(oh, ow, PH, PW) for (oh, ow) in out_sizes]

    def full2d(shape):
        return pl.BlockSpec(shape, lambda b: (0, 0))

    hs_spec = pl.BlockSpec((1, PH * PW, CFEAT), lambda b: (b, 0, 0))
    in_specs = ([hs_spec] * 4
                + [full2d(r.shape) for r in r_mats]
                + [full2d(params[k].shape)
                   for k in ("c1w", "c1b", "c2w", "c2b", "c3w", "c3b")])
    out_specs = [pl.BlockSpec((1, oh * ow, 1), lambda b: (b, 0, 0))
                 for (oh, ow) in out_sizes]
    out_shapes = [jax.ShapeDtypeStruct((bsz, oh * ow, 1), jnp.float32)
                  for (oh, ow) in out_sizes]
    scratch = ([pltpu.VMEM((PH * PW + 2 * (PW + 1), CFEAT), jnp.float32)]
               + [pltpu.VMEM((oh * ow + 2 * (ow + 1), HEAD_MID), jnp.float32)
                  for (oh, ow) in out_sizes])

    outs = pl.pallas_call(
        functools.partial(fused_head_kernel, out_sizes=tuple(out_sizes)),
        out_shape=out_shapes,
        grid=(bsz,),
        in_specs=in_specs,
        out_specs=out_specs,
        scratch_shapes=scratch,
        compiler_params=pltpu.CompilerParams(dimension_semantics=("parallel",)),
    )(*hs_in, *r_mats, params["c1w"], params["c1b"], params["c2w"],
      params["c2b"], params["c3w"], params["c3b"])

    return [outs[s].reshape(bsz, oh, ow, 1) for s, (oh, ow) in enumerate(out_sizes)]


# ------------------------------ module pieces ------------------------------
def backbone_neck_stub(params, pixel_values):
    """Stub for backbone.forward_with_filtered_kwargs + neck.

    TODO(synk): DINOv2 encoder + DPT neck (HF pretrained modules) are not
    translated; only the multi-frame fusion + (folded) LoRA patch-embedding is
    computed, producing four identical synthetic feature maps.
    """
    bsz = pixel_values.shape[0]
    cur = pixel_values[:, :, 0]
    others = pixel_values[:, :, 1:].mean(axis=2)
    fused = cur + OTHER_FRAME_INIT_WEIGHT * others              # (B, 3, H, W)
    x = fused.transpose(0, 2, 3, 1)                             # NHWC
    patches = (x.reshape(bsz, PH, PATCH, PW, PATCH, 3)
                 .transpose(0, 1, 3, 2, 4, 5)
                 .reshape(bsz * PH * PW, PATCH_DIM))
    emb = lora_patch_embed(patches, params["pe_w"], params["pe_b"],
                           params["pe_a"], params["pe_bb"])     # Pallas linear
    feat = emb.reshape(bsz, PH, PW, CFEAT)
    return [feat, feat, feat, feat]


def dares_cpe_forward(params, pixel_values):
    """DARES_cpe.forward: returns {('disp', i): (B, 1, H/2^i, W/2^i)}."""
    _, _, _, h, w = pixel_values.shape
    hidden_states = backbone_neck_stub(params, pixel_values)
    disps = fused_heads(params, hidden_states, h, w)            # 1 pallas_call
    outputs = {}
    for s in range(4):
        outputs[("disp", s)] = disps[s].transpose(0, 3, 1, 2)   # NHWC -> NCHW
    return outputs


def init_params(key):
    ks = jax.random.split(key, 8)
    p = {}
    # LoRA patch-embedding (stored already-transposed: (in, out))
    p["pe_w"] = 0.05 * jax.random.normal(ks[0], (PATCH_DIM, CFEAT), jnp.float32)
    p["pe_b"] = 0.01 * jax.random.normal(ks[1], (1, CFEAT), jnp.float32)
    p["pe_a"] = 0.05 * jax.random.normal(ks[2], (PATCH_DIM, LORA_R), jnp.float32)
    p["pe_bb"] = jnp.zeros((LORA_R, CFEAT), jnp.float32)   # LoRA B initialized to zero
    # head conv1 (3x3, CFEAT -> HEAD_MID), flattened (tap, cin) x cout
    p["c1w"] = (0.05 * jax.random.normal(ks[3], (3, 3, CFEAT, HEAD_MID), jnp.float32)
                ).reshape(9 * CFEAT, HEAD_MID)
    p["c1b"] = 0.01 * jax.random.normal(ks[4], (1, HEAD_MID), jnp.float32)
    # head conv2 (3x3, HEAD_MID -> HEAD_MID)
    p["c2w"] = (0.05 * jax.random.normal(ks[5], (3, 3, HEAD_MID, HEAD_MID), jnp.float32)
                ).reshape(9 * HEAD_MID, HEAD_MID)
    p["c2b"] = 0.01 * jax.random.normal(ks[6], (1, HEAD_MID), jnp.float32)
    # head conv3 (1x1, HEAD_MID -> 1)
    p["c3w"] = 0.05 * jax.random.normal(ks[7], (HEAD_MID, 1), jnp.float32)
    p["c3b"] = jnp.zeros((1, 1), jnp.float32)
    return p


if __name__ == "__main__":
    key = jax.random.PRNGKey(0)
    pkey, xkey = jax.random.split(key)
    params = init_params(pkey)
    # pixel_values: (B, C=3, time, H, W) matching the PyTorch forward.
    pixel_values = jax.random.normal(xkey, (B, 3, T, H, W), jnp.float32)

    outputs = dares_cpe_forward(params, pixel_values)
    outputs = jax.tree_util.tree_map(jax.block_until_ready, outputs)

    # sanity on shapes / value range (sigmoid output)
    assert outputs[("disp", 0)].shape == (B, 1, H, W)
    assert outputs[("disp", 1)].shape == (B, 1, H // 2, W // 2)
    assert outputs[("disp", 2)].shape == (B, 1, H // 4, W // 4)
    assert outputs[("disp", 3)].shape == (B, 1, H // 8, W // 8)
    for v in outputs.values():
        assert bool(jnp.all((v >= 0.0) & (v <= 1.0)))
        assert bool(jnp.all(jnp.isfinite(v)))

    print("KERNEL_OK")
</pallas_src>

<mosaic_0001>
module attributes {stable_mosaic.version = 11 : i64} {
  func.func @linear_kernel(%arg0: memref<32x48xf32, #tpu.memory_space<vmem>>, %arg1: memref<48x16xf32, #tpu.memory_space<vmem>>, %arg2: memref<1x16xf32, #tpu.memory_space<vmem>>, %arg3: memref<32x16xf32, #tpu.memory_space<vmem>>) attributes {dimension_semantics = [], scalar_prefetch = 0 : i64, scratch_operands = 0 : i64, tpu.core_type = #tpu.core_type<tc>} {
    %c0 = arith.constant 0 : index
    %c0_0 = arith.constant 0 : index
    %0 = vector.load %arg0[%c0, %c0_0] : memref<32x48xf32, #tpu.memory_space<vmem>>, vector<32x48xf32>
    %c0_1 = arith.constant 0 : index
    %c0_2 = arith.constant 0 : index
    %1 = vector.load %arg1[%c0_1, %c0_2] : memref<48x16xf32, #tpu.memory_space<vmem>>, vector<48x16xf32>
    %cst = arith.constant dense<0.000000e+00> : vector<32x16xf32>
    %2 = tpu.matmul %0, %1, %cst {dimension_numbers = #tpu.dot_dimension_numbers<[1], [0], [0], [1], [0, 0, 1, 1], [], []>} : vector<32x48xf32>, vector<48x16xf32>, vector<32x16xf32> -> vector<32x16xf32>
    %c0_3 = arith.constant 0 : index
    %c0_4 = arith.constant 0 : index
    %3 = vector.load %arg2[%c0_3, %c0_4] : memref<1x16xf32, #tpu.memory_space<vmem>>, vector<1x16xf32>
    %4 = vector.broadcast %3 : vector<1x16xf32> to vector<32x16xf32>
    %5 = arith.addf %2, %4 : vector<32x16xf32>
    %c0_5 = arith.constant 0 : index
    %c0_6 = arith.constant 0 : index
    %6 = vector.load %arg3[%c0_5, %c0_6] : memref<32x16xf32, #tpu.memory_space<vmem>>, vector<32x16xf32>
    tpu.vector_store %arg3[%c0_5, %c0_6], %5 {strides = array<i32>} : memref<32x16xf32, #tpu.memory_space<vmem>>, vector<32x16xf32>,
    return
  }
}

</mosaic_0001>

<llo_original>
// kernel: tpu_custom_call.1
$region0: #{tpu_custom_call.1}
  #allocation0 [shape = 'u32[]', space=smem, size = 0x4, offset = 0x4, fixed_abs, tag = 'smem constant byte address 0x4 - core index']
  #allocation1 [shape = 'u32[144,128]{1,0:T(1,128)}', space=vmem, size = 0x12000, scoped, tag = 'internal scratch']
  %s0 = inlined_call_operand.vmem [shape: f32[32,48], index: 0, kind: input, shape index: {}]
  %s1 = inlined_call_operand.vmem [shape: f32[48,16], index: 1, kind: input, shape index: {}]
  %s2 = inlined_call_operand.vmem [shape: f32[1,16], index: 2, kind: input, shape index: {}]
  %s3 = inlined_call_operand.vmem [shape: f32[32,16], index: 3, kind: output, shape index: {}]
  %s4 = sld [smem:[#allocation0]]
  $region22: #{tpu_custom_call.1} parent=0
    _
  %s6 = ssub.s32 1, %s4
  %s7 = scalar_select 0, %s6, %s4
  // Predicated region
  $region2: #{tpu_custom_call.1} parent=0 // pred_check
    _
  $region3: #{tpu_custom_call.1} parent=0 // pred_check_branch
    %9 = sbr.rel (0) target = $region5
  $region4: #{tpu_custom_call.1} parent=0 // pred_region
    _
  $region5: #{tpu_custom_call.1} parent=0 // pred_fallthru
    _
  // Predicated region
  $region6: #{tpu_custom_call.1} parent=0 // pred_check
    _
  $region7: #{tpu_custom_call.1} parent=0 // pred_check_branch
    %11 = sbr.rel (0) target = $region9
  $region8: #{tpu_custom_call.1} parent=0 // pred_region
    _
  $region9: #{tpu_custom_call.1} parent=0 // pred_fallthru
    _
  // Predicated region
  $region10: #{tpu_custom_call.1} parent=0 // pred_check
    _
  $region11: #{tpu_custom_call.1} parent=0 // pred_check_branch
    %13 = sbr.rel (0) target = $region13
  $region12: #{tpu_custom_call.1} parent=0 // pred_region
    _
  $region13: #{tpu_custom_call.1} parent=0 // pred_fallthru
    _
  %v14 = vld [vmem:[%s0] sm:$0xff]
  %v15 = vld [vmem:[%s0 + $0x8] sm:$0xff]
  %v16 = vld [vmem:[%s0 + $0x10] sm:$0xff]
  %v17 = vld [vmem:[%s0 + $0x18] sm:$0xff]
  %v18 = vld [vmem:[%s1] sm:$0xff]
  %v19 = vld [vmem:[%s1 + $0x8] sm:$0xff]
  %v20 = vld [vmem:[%s1 + $0x10] sm:$0xff]
  %v21 = vld [vmem:[%s1 + $0x18] sm:$0xff]
  %v22 = vld [vmem:[%s1 + $0x20] sm:$0xff]
  %v23 = vld [vmem:[%s1 + $0x28] sm:$0xff]
  %v24 = vld [vmem:[%s2] sm:$0x1]
  %v26 = vlaneseq
  %v27 = vshrl.u32 %v26, 7
  %v28 = vsub.s32 0, %v27
  %v29 = vrot.slane %v24, %v28
  %vm31 = vcmask 392192
  %v33 = vsel %vm31, %v14, 0
  %v36 = vsel %vm31, %v15, 0
  %v39 = vsel %vm31, %v16, 0
  %v42 = vsel %vm31, %v17, 0
  %44 = vmatprep.subr.mxu0 0.0
  %45 = vmatpush1.msra.mxu0 %v18
  %46 = vmatprep.subr.mxu0 0.0
  %47 = vmatpush1.msra.mxu0 %v19
  %48 = vmatprep.subr.mxu0 0.0
  %49 = vmatpush1.msra.mxu0 %v20
  %50 = vmatprep.subr.mxu0 0.0
  %51 = vmatpush1.msra.mxu0 %v21
  %52 = vmatprep.subr.mxu0 0.0
  %53 = vmatpush1.msra.mxu0 %v22
  %54 = vmatprep.subr.mxu0 0.0
  %55 = vmatpush1.msra.mxu0 %v23
  %56 = vmatprep.subr.mxu0 0.0
  %57 = vmatpush1.msra.mxu0 0.0
  %58 = vmatprep.subr.mxu0 0.0
  %59 = vmatpush1.msra.mxu0 0.0
  %60 = vmatprep.subr.mxu0 0.0
  %61 = vmatpush1.msra.mxu0 0.0
  %62 = vmatprep.subr.mxu0 0.0
  %63 = vmatpush1.msra.mxu0 0.0
  %64 = vmatprep.subr.mxu0 0.0
  %65 = vmatpush1.msra.mxu0 0.0
  %66 = vmatprep.subr.mxu0 0.0
  %67 = vmatpush1.msra.mxu0 0.0
  %68 = vmatprep.subr.mxu0 0.0
  %69 = vmatpush1.msra.mxu0 0.0
  %70 = vmatprep.subr.mxu0 0.0
  %71 = vmatpush1.msra.mxu0 0.0
  %72 = vmatprep.subr.mxu0 0.0
  %73 = vmatpush1.msra.mxu0 0.0
  %74 = vmatprep.subr.mxu0 0.0
  %75 = vmatpush1.msra.mxu0 0.0
  %76 = vmatprep.subr.mxu0 0.0
  %77 = vmatpush1.msra.mxu0 0.0
  %78 = vmatprep.subr.mxu0 0.0
  %79 = vmatpush1.msra.mxu0 0.0
  %80 = vmatprep.subr.mxu0 0.0
  %81 = vmatpush1.msra.mxu0 0.0
  %82 = vmatprep.subr.mxu0 0.0
  %83 = vmatpush1.msra.mxu0 0.0
  %84 = vmatprep.subr.mxu0 0.0
  %85 = vmatpush1.msra.mxu0 0.0
  %86 = vmatprep.subr.mxu0 0.0
  %87 = vmatpush1.msra.mxu0 0.0
  %88 = vmatprep.subr.mxu0 0.0
  %89 = vmatpush1.msra.mxu0 0.0
  %90 = vmatprep.subr.mxu0 0.0
  %91 = vmatpush1.msra.mxu0 0.0
  %92 = vmatprep.subr.mxu0 0.0
  %93 = vmatpush1.msra.mxu0 0.0
  %94 = vmatprep.subr.mxu0 0.0
  %95 = vmatpush1.msra.mxu0 0.0
  %96 = vmatprep.subr.mxu0 0.0
  %97 = vmatpush1.msra.mxu0 0.0
  %98 = vmatprep.subr.mxu0 0.0
  %99 = vmatpush1.msra.mxu0 0.0
  %100 = vmatprep.subr.mxu0 0.0
  %101 = vmatpush1.msra.mxu0 0.0
  %102 = vmatprep.subr.mxu0 0.0
  %103 = vmatpush1.msra.mxu0 0.0
  %104 = vmatprep.subr.mxu0 0.0
  %105 = vmatpush1.msra.mxu0 0.0
  %106 = vmatprep.subr.mxu0 0.0
  %107 = vmatpush1.msra.mxu0 0.0
  %108 = vmatprep.mubr.f32.mxu0 0.0
  %109 = vmatmul.mubr.f32.gmra.mrb[0].mxu0 %v33
  %v110 = vpop.f32.mrb[0].mxu0
  %v111 = vadd.f32 %v29, %v110
  %v112 = vpop.f32.mrb[0].mxu0
  %113 = vmatprep.mubr.f32.mxu0 0.0
  %114 = vmatmul.mubr.f32.gmra.mrb[0].mxu0 %v36
  %v115 = vpop.f32.mrb[0].mxu0
  %v116 = vadd.f32 %v29, %v115
  %v117 = vpop.f32.mrb[0].mxu0
  %118 = vmatprep.mubr.f32.mxu0 0.0
  %119 = vmatmul.mubr.f32.gmra.mrb[0].mxu0 %v39
  %v120 = vpop.f32.mrb[0].mxu0
  %v121 = vadd.f32 %v29, %v120
  %v122 = vpop.f32.mrb[0].mxu0
  %123 = vmatprep.mubr.f32.mxu0 0.0
  %124 = vmatmul.mubr.f32.gmra.mrb[0].mxu0 %v42
  %v125 = vpop.f32.mrb[0].mxu0
  %v126 = vadd.f32 %v29, %v125
  %v127 = vpop.f32.mrb[0].mxu0
  %128 = vdwg.mxu0
  %vm129 = vcmask 130048
  %130 = vst.msk [vmem:[%s3] sm:$0xff] %vm129, %v111
  %131 = vst.msk [vmem:[%s3 + $0x8] sm:$0xff] %vm129, %v116
  %132 = vst.msk [vmem:[%s3 + $0x10] sm:$0xff] %vm129, %v121
  %133 = vst.msk [vmem:[%s3 + $0x18] sm:$0xff] %vm129, %v126
  // Predicated region
  $region14: #{tpu_custom_call.1} parent=0 // pred_check
    _
  $region15: #{tpu_custom_call.1} parent=0 // pred_check_branch
    %135 = sbr.rel (0) target = $region17
  $region16: #{tpu_custom_call.1} parent=0 // pred_region
    _
  $region17: #{tpu_custom_call.1} parent=0 // pred_fallthru
    _
  // Predicated region
  $region18: #{tpu_custom_call.1} parent=0 // pred_check
    _
  $region19: #{tpu_custom_call.1} parent=0 // pred_check_branch
    %137 = sbr.rel (0) target = $region21
  $region20: #{tpu_custom_call.1} parent=0 // pred_region
    _
  $region21: #{tpu_custom_call.1} parent=0 // pred_fallthru
    _

</llo_original>
